<compile_context>
chip_gen: v7x
topology: tpu7x:2x2x1
jax: 0.10.0
libtpu: 0.0.40
codegen_flags: <defaults>
</compile_context>

<pallas_src>
import functools
import math

import jax
import jax.numpy as jnp
from jax import lax
from jax.experimental import pallas as pl
from jax.experimental.pallas import tpu as pltpu

LRELU = 0.1   # negative slope of the module-level nn.LeakyReLU
LPAD = 128    # lane-aligned zero border on each side of the flattened image


def _erb_kernel(H, W, x_ref, w_ref, b_ref, o_ref, xp_ref, patch_ref):
    """Fused 3x3 conv (pad=1, stride=1) + bias + LeakyReLU for one image.

    x_ref    : (1, Cin, H*W)            bf16 input (channels on sublanes, pixels on lanes)
    w_ref    : (Cout, 9*Cin)            bf16 weights, K ordered (ky, kx, cin)
    b_ref    : (Cout, 1)                f32 bias
    o_ref    : (1, Cout, H*W)           f32 output
    xp_ref   : (Cin, LPAD+H*W+LPAD)     bf16 scratch: image with zero lane borders
    patch_ref: (9*Cin, H*W)             bf16 scratch: im2col patch
    """
    Cin = x_ref.shape[1]
    HW = H * W

    # 1) Stage the image at a lane-aligned offset with zero borders.  Only the
    #    two 128-lane border blocks are zeroed (interior is fully overwritten);
    #    re-done every grid step since scratch state must not be assumed
    #    across "parallel" steps / cores.
    border = jnp.zeros((Cin, LPAD), dtype=xp_ref.dtype)
    xp_ref[:, :LPAD] = border
    xp_ref[:, LPAD + HW:] = border
    xp_ref[:, LPAD:LPAD + HW] = x_ref[0, :, :]

    # 2) Horizontal edge masks (vertical edges fall into the zero lane borders).
    col = lax.broadcasted_iota(jnp.int32, (Cin, HW), 1) % W
    mask_l = col >= 1          # tap dx = -1 reads column col-1
    mask_r = col <= W - 2      # tap dx = +1 reads column col+1

    # 3) Build the (9*Cin, H*W) im2col patch: one static lane-offset slice per
    #    tap (XLU lane rotate), horizontally masked, stored at an aligned
    #    sublane offset.
    for t in range(9):
        ky, kx = t // 3, t % 3
        off = (ky - 1) * W + (kx - 1)
        val = xp_ref[:, LPAD + off:LPAD + off + HW]
        if kx == 0:
            val = jnp.where(mask_l, val, jnp.zeros_like(val))
        elif kx == 2:
            val = jnp.where(mask_r, val, jnp.zeros_like(val))
        patch_ref[t * Cin:(t + 1) * Cin, :] = val

    # 4) One MXU contraction + bias + LeakyReLU in f32, lane-dense store.
    y = jnp.dot(w_ref[...], patch_ref[...], preferred_element_type=jnp.float32)
    y = y + b_ref[...]
    y = jnp.where(y >= 0, y, LRELU * y)
    o_ref[0, :, :] = y.astype(o_ref.dtype)


def _vmem_limit_bytes():
    try:
        cap = getattr(pltpu.get_tpu_info(), "vmem_capacity_bytes",
                      128 * 1024 * 1024)
    except Exception:
        cap = 128 * 1024 * 1024
    return min(cap // 2, 64 * 1024 * 1024)


def erb_forward(x_nchw, w_oihw, b, *, compute_dtype=jnp.bfloat16):
    """ERB.forward: LeakyReLU(Conv2d(n_feats, n_feats, 3, 1, 1)(x), 0.1).

    x_nchw: (N, Cin, H, W) f32 (PyTorch layout); returns (N, Cout, H, W) f32.
    w_oihw: (Cout, Cin, 3, 3) PyTorch conv weight;  b: (Cout,).
    """
    N, Cin, H, W = x_nchw.shape
    Cout = w_oihw.shape[0]
    HW = H * W
    assert W + 1 <= LPAD, "zero lane border must cover the +/-(W+1) tap offsets"

    # Free reshape from NCHW; bf16 feed for the MXU (f32 accumulation in-kernel).
    x = x_nchw.reshape(N, Cin, HW).astype(compute_dtype)
    # K ordering (ky, kx, cin) matches the in-kernel patch layout.
    w_mat = jnp.transpose(w_oihw, (0, 2, 3, 1)).reshape(Cout, 9 * Cin)
    w_mat = w_mat.astype(compute_dtype)
    b2 = b.reshape(Cout, 1).astype(jnp.float32)

    kernel = functools.partial(_erb_kernel, H, W)

    out = pl.pallas_call(
        kernel,
        out_shape=jax.ShapeDtypeStruct((N, Cout, HW), jnp.float32),
        grid_spec=pltpu.PrefetchScalarGridSpec(
            num_scalar_prefetch=0,
            grid=(N,),
            in_specs=[
                pl.BlockSpec((1, Cin, HW), lambda n: (n, 0, 0)),
                pl.BlockSpec((Cout, 9 * Cin), lambda n: (0, 0)),
                pl.BlockSpec((Cout, 1), lambda n: (0, 0)),
            ],
            out_specs=pl.BlockSpec((1, Cout, HW), lambda n: (n, 0, 0)),
            scratch_shapes=[
                pltpu.VMEM((Cin, LPAD + HW + LPAD), compute_dtype),
                pltpu.VMEM((9 * Cin, HW), compute_dtype),
            ],
        ),
        compiler_params=pltpu.CompilerParams(
            dimension_semantics=("parallel",),
            vmem_limit_bytes=_vmem_limit_bytes(),
        ),
    )(x, w_mat, b2)

    return out.reshape(N, Cout, H, W)   # free reshape back to NCHW


# --------------------------- pure-JAX reference -----------------------------
def erb_reference(x_nchw, w_oihw, b):
    y = lax.conv_general_dilated(
        x_nchw, w_oihw, window_strides=(1, 1), padding="SAME",
        dimension_numbers=("NCHW", "OIHW", "NCHW"),
        precision=lax.Precision.HIGHEST)
    y = y + b[None, :, None, None]
    return jnp.where(y >= 0, y, LRELU * y)


if __name__ == "__main__":
    key = jax.random.PRNGKey(0)
    k_x, k_w, k_b = jax.random.split(key, 3)

    # ERB(n_feats=32) on a 16x16 feature map, batch 2 (NCHW like the module).
    N, C, H, W = 2, 32, 16, 16
    x = jax.random.normal(k_x, (N, C, H, W), jnp.float32)
    w = jax.random.normal(k_w, (C, C, 3, 3), jnp.float32) / math.sqrt(9 * C)
    b = 0.01 * jax.random.normal(k_b, (C,), jnp.float32)

    out = jax.block_until_ready(erb_forward(x, w, b))
    assert out.shape == (N, C, H, W), out.shape

    # Kernel-correctness check: same bf16-rounded operands through an f32
    # HIGHEST-precision conv -> only accumulation order differs (~1e-6);
    # any layout/indexing bug shows up as O(0.1..1).
    x_q = x.astype(jnp.bfloat16).astype(jnp.float32)
    w_q = w.astype(jnp.bfloat16).astype(jnp.float32)
    ref_q = jax.block_until_ready(erb_reference(x_q, w_q, b))
    err_q = float(jnp.max(jnp.abs(out - ref_q)))
    assert err_q < 1e-3, f"mismatch vs bf16-operand reference: {err_q}"

    # Module-fidelity check vs the full-f32 reference (bf16 operand rounding,
    # f32 accumulation): expected ~1e-2.
    ref_f = jax.block_until_ready(erb_reference(x, w, b))
    err_f = float(jnp.max(jnp.abs(out - ref_f)))
    assert err_f < 5e-2, f"mismatch vs f32 reference: {err_f}"

    print("KERNEL_OK")
</pallas_src>

<mosaic_0001>
module attributes {stable_mosaic.version = 11 : i64} {
  func.func @_erb_kernel(%arg0: i32, %arg1: memref<1x32x256xbf16, #tpu.memory_space<vmem>>, %arg2: memref<32x288xbf16, #tpu.memory_space<vmem>>, %arg3: memref<32x1xf32, #tpu.memory_space<vmem>>, %arg4: memref<1x32x256xf32, #tpu.memory_space<vmem>>, %arg5: memref<32x512xbf16, #tpu.memory_space<vmem>>, %arg6: memref<288x256xbf16, #tpu.memory_space<vmem>>) attributes {dimension_semantics = [#tpu.dimension_semantics<parallel>], iteration_bounds = array<i64: 2>, scalar_prefetch = 0 : i64, scratch_operands = 2 : i64, tpu.core_type = #tpu.core_type<tc>, window_params = [{transform_indices = @transform_0, window_bounds = array<i64: 1, 32, 256>}, {pipeline_mode = #tpu.pipeline_mode<synchronous>, transform_indices = @transform_1, window_bounds = array<i64: 32, 288>}, {pipeline_mode = #tpu.pipeline_mode<synchronous>, transform_indices = @transform_2, window_bounds = array<i64: 32, 1>}, {transform_indices = @transform_3, window_bounds = array<i64: 1, 32, 256>}]} {
    %cst = arith.constant 0.000000e+00 : bf16
    %0 = vector.broadcast %cst : bf16 to vector<32x128xbf16>
    %c0 = arith.constant 0 : index
    %c0_0 = arith.constant 0 : index
    %1 = vector.load %arg5[%c0, %c0_0] : memref<32x512xbf16, #tpu.memory_space<vmem>>, vector<32x128xbf16>
    tpu.vector_store %arg5[%c0, %c0_0], %0 {strides = array<i32>} : memref<32x512xbf16, #tpu.memory_space<vmem>>, vector<32x128xbf16>,
    %c0_1 = arith.constant 0 : index
    %c384 = arith.constant 384 : index
    %2 = vector.load %arg5[%c0_1, %c384] : memref<32x512xbf16, #tpu.memory_space<vmem>>, vector<32x128xbf16>
    tpu.vector_store %arg5[%c0_1, %c384], %0 {strides = array<i32>} : memref<32x512xbf16, #tpu.memory_space<vmem>>, vector<32x128xbf16>,
    %c0_2 = arith.constant 0 : index
    %c0_3 = arith.constant 0 : index
    %c0_4 = arith.constant 0 : index
    %3 = vector.load %arg1[%c0_2, %c0_3, %c0_4] : memref<1x32x256xbf16, #tpu.memory_space<vmem>>, vector<1x32x256xbf16>
    %4 = vector.shape_cast %3 : vector<1x32x256xbf16> to vector<32x256xbf16>
    %c0_5 = arith.constant 0 : index
    %c128 = arith.constant 128 : index
    %5 = vector.load %arg5[%c0_5, %c128] : memref<32x512xbf16, #tpu.memory_space<vmem>>, vector<32x256xbf16>
    tpu.vector_store %arg5[%c0_5, %c128], %4 {strides = array<i32>} : memref<32x512xbf16, #tpu.memory_space<vmem>>, vector<32x256xbf16>,
    %6 = tpu.iota {dimensions = array<i32: 1>} : vector<32x256xi32>
    %c16_i32 = arith.constant 16 : i32
    %c0_i32 = arith.constant 0 : i32
    %7 = arith.cmpi eq, %c16_i32, %c0_i32 : i32
    %c1_i32 = arith.constant 1 : i32
    %8 = arith.select %7, %c1_i32, %c16_i32 : i32
    %9 = vector.broadcast %8 : i32 to vector<32x256xi32>
    %10 = arith.remsi %6, %9 : vector<32x256xi32>
    %c0_i32_6 = arith.constant 0 : i32
    %11 = vector.broadcast %c0_i32_6 : i32 to vector<32x256xi32>
    %12 = arith.cmpi ne, %10, %11 : vector<32x256xi32>
    %c0_i32_7 = arith.constant 0 : i32
    %13 = vector.broadcast %c0_i32_7 : i32 to vector<32x256xi32>
    %14 = arith.cmpi slt, %10, %13 : vector<32x256xi32>
    %c0_i32_8 = arith.constant 0 : i32
    %15 = arith.cmpi slt, %8, %c0_i32_8 : i32
    %16 = vector.broadcast %15 : i1 to vector<32x256xi1>
    %17 = vector.broadcast %16 : vector<32x256xi1> to vector<32x256xi1>
    %18 = arith.xori %14, %17 : vector<32x256xi1>
    %19 = arith.andi %18, %12 : vector<32x256xi1>
    %20 = vector.broadcast %8 : i32 to vector<32x256xi32>
    %21 = arith.addi %10, %20 : vector<32x256xi32>
    %22 = arith.select %19, %21, %10 : vector<32x256xi1>, vector<32x256xi32>
    %c1_i32_9 = arith.constant 1 : i32
    %23 = vector.broadcast %c1_i32_9 : i32 to vector<32x256xi32>
    %24 = arith.cmpi sge, %22, %23 : vector<32x256xi32>
    %c14_i32 = arith.constant 14 : i32
    %25 = vector.broadcast %c14_i32 : i32 to vector<32x256xi32>
    %26 = arith.cmpi sle, %22, %25 : vector<32x256xi32>
    %c0_10 = arith.constant 0 : index
    %c111 = arith.constant 111 : index
    %27 = vector.load %arg5[%c0_10, %c111] : memref<32x512xbf16, #tpu.memory_space<vmem>>, vector<32x256xbf16>
    %cst_11 = arith.constant 0.000000e+00 : bf16
    %28 = vector.broadcast %cst_11 : bf16 to vector<32x256xbf16>
    %29 = arith.select %24, %27, %28 : vector<32x256xi1>, vector<32x256xbf16>
    %c0_12 = arith.constant 0 : index
    %c0_13 = arith.constant 0 : index
    %30 = vector.load %arg6[%c0_12, %c0_13] : memref<288x256xbf16, #tpu.memory_space<vmem>>, vector<32x256xbf16>
    tpu.vector_store %arg6[%c0_12, %c0_13], %29 {strides = array<i32>} : memref<288x256xbf16, #tpu.memory_space<vmem>>, vector<32x256xbf16>,
    %c0_14 = arith.constant 0 : index
    %c112 = arith.constant 112 : index
    %31 = vector.load %arg5[%c0_14, %c112] : memref<32x512xbf16, #tpu.memory_space<vmem>>, vector<32x256xbf16>
    %c32 = arith.constant 32 : index
    %c0_15 = arith.constant 0 : index
    %32 = vector.load %arg6[%c32, %c0_15] : memref<288x256xbf16, #tpu.memory_space<vmem>>, vector<32x256xbf16>
    tpu.vector_store %arg6[%c32, %c0_15], %31 {strides = array<i32>} : memref<288x256xbf16, #tpu.memory_space<vmem>>, vector<32x256xbf16>,
    %c0_16 = arith.constant 0 : index
    %c113 = arith.constant 113 : index
    %33 = vector.load %arg5[%c0_16, %c113] : memref<32x512xbf16, #tpu.memory_space<vmem>>, vector<32x256xbf16>
    %cst_17 = arith.constant 0.000000e+00 : bf16
    %34 = vector.broadcast %cst_17 : bf16 to vector<32x256xbf16>
    %35 = arith.select %26, %33, %34 : vector<32x256xi1>, vector<32x256xbf16>
    %c64 = arith.constant 64 : index
    %c0_18 = arith.constant 0 : index
    %36 = vector.load %arg6[%c64, %c0_18] : memref<288x256xbf16, #tpu.memory_space<vmem>>, vector<32x256xbf16>
    tpu.vector_store %arg6[%c64, %c0_18], %35 {strides = array<i32>} : memref<288x256xbf16, #tpu.memory_space<vmem>>, vector<32x256xbf16>,
    %c0_19 = arith.constant 0 : index
    %c127 = arith.constant 127 : index
    %37 = vector.load %arg5[%c0_19, %c127] : memref<32x512xbf16, #tpu.memory_space<vmem>>, vector<32x256xbf16>
    %cst_20 = arith.constant 0.000000e+00 : bf16
    %38 = vector.broadcast %cst_20 : bf16 to vector<32x256xbf16>
    %39 = arith.select %24, %37, %38 : vector<32x256xi1>, vector<32x256xbf16>
    %c96 = arith.constant 96 : index
    %c0_21 = arith.constant 0 : index
    %40 = vector.load %arg6[%c96, %c0_21] : memref<288x256xbf16, #tpu.memory_space<vmem>>, vector<32x256xbf16>
    tpu.vector_store %arg6[%c96, %c0_21], %39 {strides = array<i32>} : memref<288x256xbf16, #tpu.memory_space<vmem>>, vector<32x256xbf16>,
    %c0_22 = arith.constant 0 : index
    %c128_23 = arith.constant 128 : index
    %41 = vector.load %arg5[%c0_22, %c128_23] : memref<32x512xbf16, #tpu.memory_space<vmem>>, vector<32x256xbf16>
    %c128_24 = arith.constant 128 : index
    %c0_25 = arith.constant 0 : index
    %42 = vector.load %arg6[%c128_24, %c0_25] : memref<288x256xbf16, #tpu.memory_space<vmem>>, vector<32x256xbf16>
    tpu.vector_store %arg6[%c128_24, %c0_25], %41 {strides = array<i32>} : memref<288x256xbf16, #tpu.memory_space<vmem>>, vector<32x256xbf16>,
    %c0_26 = arith.constant 0 : index
    %c129 = arith.constant 129 : index
    %43 = vector.load %arg5[%c0_26, %c129] : memref<32x512xbf16, #tpu.memory_space<vmem>>, vector<32x256xbf16>
    %cst_27 = arith.constant 0.000000e+00 : bf16
    %44 = vector.broadcast %cst_27 : bf16 to vector<32x256xbf16>
    %45 = arith.select %26, %43, %44 : vector<32x256xi1>, vector<32x256xbf16>
    %c160 = arith.constant 160 : index
    %c0_28 = arith.constant 0 : index
    %46 = vector.load %arg6[%c160, %c0_28] : memref<288x256xbf16, #tpu.memory_space<vmem>>, vector<32x256xbf16>
    tpu.vector_store %arg6[%c160, %c0_28], %45 {strides = array<i32>} : memref<288x256xbf16, #tpu.memory_space<vmem>>, vector<32x256xbf16>,
    %c0_29 = arith.constant 0 : index
    %c143 = arith.constant 143 : index
    %47 = vector.load %arg5[%c0_29, %c143] : memref<32x512xbf16, #tpu.memory_space<vmem>>, vector<32x256xbf16>
    %cst_30 = arith.constant 0.000000e+00 : bf16
    %48 = vector.broadcast %cst_30 : bf16 to vector<32x256xbf16>
    %49 = arith.select %24, %47, %48 : vector<32x256xi1>, vector<32x256xbf16>
    %c192 = arith.constant 192 : index
    %c0_31 = arith.constant 0 : index
    %50 = vector.load %arg6[%c192, %c0_31] : memref<288x256xbf16, #tpu.memory_space<vmem>>, vector<32x256xbf16>
    tpu.vector_store %arg6[%c192, %c0_31], %49 {strides = array<i32>} : memref<288x256xbf16, #tpu.memory_space<vmem>>, vector<32x256xbf16>,
    %c0_32 = arith.constant 0 : index
    %c144 = arith.constant 144 : index
    %51 = vector.load %arg5[%c0_32, %c144] : memref<32x512xbf16, #tpu.memory_space<vmem>>, vector<32x256xbf16>
    %c224 = arith.constant 224 : index
    %c0_33 = arith.constant 0 : index
    %52 = vector.load %arg6[%c224, %c0_33] : memref<288x256xbf16, #tpu.memory_space<vmem>>, vector<32x256xbf16>
    tpu.vector_store %arg6[%c224, %c0_33], %51 {strides = array<i32>} : memref<288x256xbf16, #tpu.memory_space<vmem>>, vector<32x256xbf16>,
    %c0_34 = arith.constant 0 : index
    %c145 = arith.constant 145 : index
    %53 = vector.load %arg5[%c0_34, %c145] : memref<32x512xbf16, #tpu.memory_space<vmem>>, vector<32x256xbf16>
    %cst_35 = arith.constant 0.000000e+00 : bf16
    %54 = vector.broadcast %cst_35 : bf16 to vector<32x256xbf16>
    %55 = arith.select %26, %53, %54 : vector<32x256xi1>, vector<32x256xbf16>
    %c256 = arith.constant 256 : index
    %c0_36 = arith.constant 0 : index
    %56 = vector.load %arg6[%c256, %c0_36] : memref<288x256xbf16, #tpu.memory_space<vmem>>, vector<32x256xbf16>
    tpu.vector_store %arg6[%c256, %c0_36], %55 {strides = array<i32>} : memref<288x256xbf16, #tpu.memory_space<vmem>>, vector<32x256xbf16>,
    %c0_37 = arith.constant 0 : index
    %c0_38 = arith.constant 0 : index
    %57 = vector.load %arg2[%c0_37, %c0_38] : memref<32x288xbf16, #tpu.memory_space<vmem>>, vector<32x288xbf16>
    %c0_39 = arith.constant 0 : index
    %c0_40 = arith.constant 0 : index
    %58 = vector.load %arg6[%c0_39, %c0_40] : memref<288x256xbf16, #tpu.memory_space<vmem>>, vector<288x256xbf16>
    %cst_41 = arith.constant dense<0.000000e+00> : vector<32x256xf32>
    %59 = tpu.matmul %57, %58, %cst_41 {dimension_numbers = #tpu.dot_dimension_numbers<[1], [0], [0], [1], [0, 0, 1, 1], [], []>} : vector<32x288xbf16>, vector<288x256xbf16>, vector<32x256xf32> -> vector<32x256xf32>
    %c0_42 = arith.constant 0 : index
    %c0_43 = arith.constant 0 : index
    %60 = vector.load %arg3[%c0_42, %c0_43] : memref<32x1xf32, #tpu.memory_space<vmem>>, vector<32x1xf32>
    %61 = vector.broadcast %60 : vector<32x1xf32> to vector<32x256xf32>
    %62 = arith.addf %59, %61 : vector<32x256xf32>
    %cst_44 = arith.constant 0.000000e+00 : f32
    %63 = vector.broadcast %cst_44 : f32 to vector<32x256xf32>
    %64 = arith.cmpf oge, %62, %63 : vector<32x256xf32>
    %cst_45 = arith.constant 1.000000e-01 : f32
    %65 = vector.broadcast %cst_45 : f32 to vector<32x256xf32>
    %66 = arith.mulf %65, %62 : vector<32x256xf32>
    %67 = arith.select %64, %62, %66 : vector<32x256xi1>, vector<32x256xf32>
    %c0_46 = arith.constant 0 : index
    %c0_47 = arith.constant 0 : index
    %c0_48 = arith.constant 0 : index
    %68 = vector.load %arg4[%c0_46, %c0_47, %c0_48] : memref<1x32x256xf32, #tpu.memory_space<vmem>>, vector<1x32x256xf32>
    %69 = vector.shape_cast %68 : vector<1x32x256xf32> to vector<32x256xf32>
    %70 = vector.shape_cast %67 : vector<32x256xf32> to vector<1x32x256xf32>
    tpu.vector_store %arg4[%c0_46, %c0_47, %c0_48], %70 {strides = array<i32>} : memref<1x32x256xf32, #tpu.memory_space<vmem>>, vector<1x32x256xf32>,
    return
  }
  func.func @transform_0(%arg0: i32) -> (i32, i32, i32) {
    %c0_i32 = arith.constant 0 : i32
    %c0_i32_0 = arith.constant 0 : i32
    %c0_i32_1 = arith.constant 0 : i32
    return %arg0, %c0_i32, %c0_i32_0 : i32, i32, i32
  }
  func.func @transform_1(%arg0: i32) -> (i32, i32) {
    %c0_i32 = arith.constant 0 : i32
    %c0_i32_0 = arith.constant 0 : i32
    %c0_i32_1 = arith.constant 0 : i32
    return %c0_i32, %c0_i32_0 : i32, i32
  }
  func.func @transform_2(%arg0: i32) -> (i32, i32) {
    %c0_i32 = arith.constant 0 : i32
    %c0_i32_0 = arith.constant 0 : i32
    %c0_i32_1 = arith.constant 0 : i32
    return %c0_i32, %c0_i32_0 : i32, i32
  }
  func.func @transform_3(%arg0: i32) -> (i32, i32, i32) {
    %c0_i32 = arith.constant 0 : i32
    %c0_i32_0 = arith.constant 0 : i32
    %c0_i32_1 = arith.constant 0 : i32
    return %arg0, %c0_i32, %c0_i32_0 : i32, i32, i32
  }
}

</mosaic_0001>

<llo_original>
// kernel: tpu_custom_call.1
$region0: #{tpu_custom_call.1}
  #allocation0 [shape = 'u32[]', space=smem, size = 0x4, offset = 0x4, fixed_abs, tag = 'smem constant byte address 0x4 - core index']
  #allocation1 [shape = 'u32[144,128]{1,0:T(1,128)}', space=vmem, size = 0x12000, scoped, tag = 'internal scratch']
  #allocation2 [shape = 'bf16[32,512]{1,0:T(16,128)(2,1)}', space=vmem, size = 0x8000, scoped, tag = 'scratch operand']
  #allocation3 [shape = 'bf16[288,256]{1,0:T(16,128)(2,1)}', space=vmem, size = 0x24000, scoped, tag = 'scratch operand']
  %s0 = inlined_call_operand.hbm [shape: bf16[2,32,256], index: 0, kind: input, shape index: {}]
  %s1 = inlined_call_operand.hbm [shape: bf16[32,288], index: 1, kind: input, shape index: {}]
  %s2 = inlined_call_operand.hbm [shape: f32[32,1], index: 2, kind: input, shape index: {}]
  %s3 = inlined_call_operand.hbm [shape: f32[2,32,256], index: 3, kind: output, shape index: {}]
  %s4 = sld [smem:[#allocation0]]
  $region57: #{tpu_custom_call.1} parent=0
    _
  %s6 = ssub.s32 1, %s4
  %s7 = scalar_select 0, %s6, %s4
  $region1: #{tpu_custom_call.1} parent=0
    #allocation4 [shape = 'u8[32768]{0}', space=vmem, size = 0x8000, scoped, tag = 'input window, operand 0']
    #allocation5 [shape = 's32[2]{0}', space=sflag, size = 0x8, scoped, tag = 'scoped memory for tpu_custom_call.1']
    #allocation6 [shape = 's32[2]{0}', space=sflag, size = 0x8, scoped, tag = 'scoped memory for tpu_custom_call.1']
    #allocation7 [shape = 'u8[24576]{0}', space=vmem, size = 0x6000, scoped, tag = 'input window, operand 1, single buffered']
    #allocation8 [shape = 's32[1]{0}', space=sflag, size = 0x4, scoped, tag = 'scoped memory for tpu_custom_call.1']
    #allocation9 [shape = 'u8[16384]{0}', space=vmem, size = 0x4000, scoped, tag = 'input window, operand 2, single buffered']
    #allocation10 [shape = 'u8[65536]{0}', space=vmem, size = 0x10000, scoped, tag = 'output window, operand 0']
    %8 = vsyncpa [#allocation5], 0
    %s9 = scalar_lea.sflag [#allocation5], 1
    %10 = vsyncpa %s9, 0
    %11 = vsyncpa [#allocation8], 0
    %12 = vsyncpa [#allocation6], 0
    %s13 = scalar_lea.sflag [#allocation6], 1
    %14 = vsyncpa %s13, 0
    loop: start=0, step=1, limit=4
    $region2: #{tpu_custom_call.1} parent=1 // loop_pre_header
      _
    $region3: #{tpu_custom_call.1} parent=1 // loop_header
      %s16 = sphi 0, %s20
      %p17 = scmp.ge.s32.totalorder %s16, 4
      %s26 = sphi 0, %s28
      %s29 = sphi 0, %s26
      %s30 = sphi 0, %s29
      %s46 = sphi 0, %s30
      %s50 = sphi 0, %s50
      %s52 = sphi 0, %s50
      %s53 = sphi 0, %s52
      %s67 = sphi 0, %s53
      %s71 = sphi 0, %s71
      %s73 = sphi 0, %s71
      %s74 = sphi 0, %s73
      %s88 = sphi 0, %s74
      %s94 = sphi 0, %s96
      %s97 = sphi 0, %s94
      %s98 = sphi 0, %s97
      %s114 = sphi 0, %s98
    $region4: #{tpu_custom_call.1} parent=1 // loop_header_branch
      %19 = sbr.rel (%p17) target = $region8
    $region5: #{tpu_custom_call.1} parent=1 // loop_body
      %s21 = ssub.s32 %s16, 1
      %s22 = ssub.s32 %s16, 2
      %s23 = sadd.s32 %s16, 1
      %s24 = ssub.s32 %s16, %s23
      %p25 = scmp.eq.s32.totalorder %s24, 0
      %s27 = sadd.s32 %s26, 1
      %s28 = scalar_select %p25, %s26, %s27
      %p31 = pneg %p25
      %p32 = scmp.eq.s32.totalorder %s16, 1
      %p33 = por %p31, %p32
      %p34 = scmp.ne.s32.totalorder %s26, %s29
      %p35 = scmp.eq.s32.totalorder %s16, 0
      %p36 = por %p34, %p35
      %p37 = scmp.ne.s32.totalorder %s26, %s29
      %p38 = scmp.eq.s32.totalorder %s21, 1
      %p39 = por %p37, %p38
      %p40 = scmp.ne.s32.totalorder %s29, %s30
      %p41 = scmp.eq.s32.totalorder %s21, 0
      %p42 = por %p40, %p41
      %p43 = scmp.ne.s32.totalorder %s29, %s30
      %p44 = scmp.eq.s32.totalorder %s22, 1
      %p45 = por %p43, %p44
      %p47 = scmp.ne.s32.totalorder %s30, %s46
      %p48 = scmp.eq.s32.totalorder %s22, 0
      %p49 = por %p47, %p48
      %s51 = sadd.s32 %s50, 1
      %p54 = scmp.eq.s32.totalorder %s16, 1
      %p55 = scmp.ne.s32.totalorder %s50, %s52
      %p56 = scmp.eq.s32.totalorder %s16, 0
      %p57 = por %p55, %p56
      %p58 = scmp.ne.s32.totalorder %s50, %s52
      %p59 = scmp.eq.s32.totalorder %s21, 1
      %p60 = por %p58, %p59
      %p61 = scmp.ne.s32.totalorder %s52, %s53
      %p62 = scmp.eq.s32.totalorder %s21, 0
      %p63 = por %p61, %p62
      %p64 = scmp.ne.s32.totalorder %s52, %s53
      %p65 = scmp.eq.s32.totalorder %s22, 1
      %p66 = por %p64, %p65
      %p68 = scmp.ne.s32.totalorder %s53, %s67
      %p69 = scmp.eq.s32.totalorder %s22, 0
      %p70 = por %p68, %p69
      %s72 = sadd.s32 %s71, 1
      %p75 = scmp.eq.s32.totalorder %s16, 1
      %p76 = scmp.ne.s32.totalorder %s71, %s73
      %p77 = scmp.eq.s32.totalorder %s16, 0
      %p78 = por %p76, %p77
      %p79 = scmp.ne.s32.totalorder %s71, %s73
      %p80 = scmp.eq.s32.totalorder %s21, 1
      %p81 = por %p79, %p80
      %p82 = scmp.ne.s32.totalorder %s73, %s74
      %p83 = scmp.eq.s32.totalorder %s21, 0
      %p84 = por %p82, %p83
      %p85 = scmp.ne.s32.totalorder %s73, %s74
      %p86 = scmp.eq.s32.totalorder %s22, 1
      %p87 = por %p85, %p86
      %p89 = scmp.ne.s32.totalorder %s74, %s88
      %p90 = scmp.eq.s32.totalorder %s22, 0
      %p91 = por %p89, %p90
      %s92 = ssub.s32 %s16, %s23
      %p93 = scmp.eq.s32.totalorder %s92, 0
      %s95 = sadd.s32 %s94, 1
      %s96 = scalar_select %p93, %s94, %s95
      %p99 = pneg %p93
      %p100 = scmp.eq.s32.totalorder %s16, 1
      %p101 = por %p99, %p100
      %p102 = scmp.ne.s32.totalorder %s94, %s97
      %p103 = scmp.eq.s32.totalorder %s16, 0
      %p104 = por %p102, %p103
      %p105 = scmp.ne.s32.totalorder %s94, %s97
      %p106 = scmp.eq.s32.totalorder %s21, 1
      %p107 = por %p105, %p106
      %p108 = scmp.ne.s32.totalorder %s97, %s98
      %p109 = scmp.eq.s32.totalorder %s21, 0
      %p110 = por %p108, %p109
      %p111 = scmp.ne.s32.totalorder %s97, %s98
      %p112 = scmp.eq.s32.totalorder %s22, 1
      %p113 = por %p111, %p112
      %p115 = scmp.ne.s32.totalorder %s98, %s114
      %p116 = scmp.eq.s32.totalorder %s22, 0
      %p117 = por %p115, %p116
      %p118 = scmp.le.s32.totalorder 1, %s16
      %p119 = scmp.lt.s32.totalorder %s16, 3
      %p120 = pnand %p118, %p119
      %p121 = pneg %p120
      // Predicated region
      $region9: #{tpu_custom_call.1} parent=5 // pred_check
        _
      $region10: #{tpu_custom_call.1} parent=5 // pred_check_branch
        %123 = sbr.rel (%p120) target = $region12
      $region11: #{tpu_custom_call.1} parent=5 // pred_region
        %s124 = ssub.s32 %s16, 1
        // Predicated region
        $region13: #{tpu_custom_call.1} parent=11 // pred_check
          %p125 = pneg %p63
        $region14: #{tpu_custom_call.1} parent=11 // pred_check_branch
          %127 = sbr.rel (%p125) target = $region16
        $region15: #{tpu_custom_call.1} parent=11 // pred_region
          %s129 = ssub.s32 768, 768
          %130 = vsyncadd [#allocation8], %s129
          %s131 = sshll.u32 [#allocation7], 4
          %s132 = int_to_ptr.vmem [resolvable:$true] %s131
          %137 = dma.hbm_to_vmem [thread:$0]  %s1, 768, %s132, [#allocation8], 192, 192, 12
        $region16: #{tpu_custom_call.1} parent=11 // pred_fallthru
          _
        // Predicated region
        $region17: #{tpu_custom_call.1} parent=11 // pred_check
          %p138 = pneg %p84
        $region18: #{tpu_custom_call.1} parent=11 // pred_check_branch
          %140 = sbr.rel (%p138) target = $region20
        $region19: #{tpu_custom_call.1} parent=11 // pred_region
          %s142 = ssub.s32 512, 512
          %143 = vsyncadd [#allocation8], %s142
          %s144 = sshll.u32 [#allocation9], 4
          %s145 = int_to_ptr.vmem [resolvable:$true] %s144
          %150 = dma.hbm_to_vmem [thread:$0]  %s2, 512, %s145, [#allocation8], 128, 128, 8
        $region20: #{tpu_custom_call.1} parent=11 // pred_fallthru
          _
      $region12: #{tpu_custom_call.1} parent=5 // pred_fallthru
        _
      %p151 = scmp.lt.s32.totalorder %s16, 2
      // Predicated region
      $region21: #{tpu_custom_call.1} parent=5 // pred_check
        %p152 = pneg %p151
      $region22: #{tpu_custom_call.1} parent=5 // pred_check_branch
        %154 = sbr.rel (%p152) target = $region24
      $region23: #{tpu_custom_call.1} parent=5 // pred_region
        // Predicated region
        $region25: #{tpu_custom_call.1} parent=23 // pred_check
          %p155 = pneg %p36
        $region26: #{tpu_custom_call.1} parent=23 // pred_check_branch
          %157 = sbr.rel (%p155) target = $region28
        $region27: #{tpu_custom_call.1} parent=23 // pred_region
          %s158 = sand.u32 %s26, 1
          %s159 = scalar_lea.sflag [#allocation5], %s158
          %s160 = sand.u32 %s26, 1
          %s161 = smul.addr %s160, 32
          %s162 = scalar_lea.vmem [#allocation4], %s161
          %s164 = ssub.s32 512, 512
          %165 = vsyncadd %s159, %s164
          %s166 = smul.addr %s16, 8
          %s167 = smul.addr %s166, 64
          %s168 = scalar_lea.hbm %s0, %s167
          %s169 = sshll.u32 %s162, 4
          %s170 = int_to_ptr.vmem [resolvable:$true] %s169
          %175 = dma.hbm_to_vmem [thread:$0]  %s168, 512, %s170, %s159, 128, 128, 8
        $region28: #{tpu_custom_call.1} parent=23 // pred_fallthru
          _
      $region24: #{tpu_custom_call.1} parent=5 // pred_fallthru
        _
      %p176 = scmp.le.s32.totalorder 1, %s16
      %p177 = scmp.lt.s32.totalorder %s16, 3
      %p178 = pnand %p176, %p177
      %p179 = pneg %p178
      // Predicated region
      $region29: #{tpu_custom_call.1} parent=5 // pred_check
        _
      $region30: #{tpu_custom_call.1} parent=5 // pred_check_branch
        %181 = sbr.rel (%p178) target = $region32
      $region31: #{tpu_custom_call.1} parent=5 // pred_region
        %s182 = ssub.s32 %s16, 1
        %s183 = sand.u32 %s29, 1
        %s184 = scalar_lea.sflag [#allocation5], %s183
        %s185 = sand.u32 %s29, 1
        %s186 = smul.addr %s185, 32
        %s187 = scalar_lea.vmem [#allocation4], %s186
        // Predicated region
        $region33: #{tpu_custom_call.1} parent=31 // pred_check
          %p188 = pneg %p42
        $region34: #{tpu_custom_call.1} parent=31 // pred_check_branch
          %190 = sbr.rel (%p188) target = $region36
        $region35: #{tpu_custom_call.1} parent=31 // pred_region
          %191 = dma.done %s184, 512
        $region36: #{tpu_custom_call.1} parent=31 // pred_fallthru
          _
        // Predicated region
        $region37: #{tpu_custom_call.1} parent=31 // pred_check
          %p192 = pneg %p63
        $region38: #{tpu_custom_call.1} parent=31 // pred_check_branch
          %194 = sbr.rel (%p192) target = $region40
        $region39: #{tpu_custom_call.1} parent=31 // pred_region
          %195 = dma.done [#allocation8], 768
        $region40: #{tpu_custom_call.1} parent=31 // pred_fallthru
          _
        // Predicated region
        $region41: #{tpu_custom_call.1} parent=31 // pred_check
          %p196 = pneg %p84
        $region42: #{tpu_custom_call.1} parent=31 // pred_check_branch
          %198 = sbr.rel (%p196) target = $region44
        $region43: #{tpu_custom_call.1} parent=31 // pred_region
          %199 = dma.done [#allocation8], 512
        $region44: #{tpu_custom_call.1} parent=31 // pred_fallthru
          _
        %s200 = sand.u32 %s29, 1
        %s201 = scalar_lea.sflag [#allocation5], %s200
        %s202 = sand.u32 %s29, 1
        %s203 = smul.addr %s202, 32
        %s204 = scalar_lea.vmem [#allocation4], %s203
        %p205 = pneg %p42
        %p206 = pneg %p39
        %p207 = pneg %p63
        %p208 = pneg %p60
        %p209 = pneg %p84
        %p210 = pneg %p81
        %p211 = pneg %p110
        %p212 = pneg %p107
        %s213 = sand.u32 %s97, 1
        %s214 = scalar_lea.sflag [#allocation6], %s213
        %s215 = sand.u32 %s97, 1
        %s216 = smul.addr %s215, 64
        %s217 = scalar_lea.vmem [#allocation10], %s216
        %221 = vst [vmem:[#allocation2] sm:$0xff] 0
        %222 = vst [vmem:[#allocation2 + $0x20] sm:$0xff] 0
        %223 = vst [vmem:[#allocation2 + $0x18] sm:$0xff] 0
        %224 = vst [vmem:[#allocation2 + $0x38] sm:$0xff] 0
        %v225 = vld [vmem:[%s187] sm:$0xff]
        %v226 = vld [vmem:[%s187 + $0x8] sm:$0xff]
        %v227 = vld [vmem:[%s187 + $0x10] sm:$0xff]
        %v228 = vld [vmem:[%s187 + $0x18] sm:$0xff]
        %v233 = vunpack.c.l.b16 %v225
        %v234 = vunpack.c.h.b16 %v225
        %v235 = vunpack.c.l.b16 %v226
        %v236 = vunpack.c.h.b16 %v226
        %v237 = vunpack.c.l.b16 %v227
        %v238 = vunpack.c.h.b16 %v227
        %v239 = vunpack.c.l.b16 %v228
        %v240 = vunpack.c.h.b16 %v228
        %v241 = vpack.c.b16 %v235, %v233
        %v242 = vpack.c.b16 %v236, %v234
        %v243 = vpack.c.b16 %v239, %v237
        %v244 = vpack.c.b16 %v240, %v238
        %249 = vst [vmem:[#allocation2 + $0x8] sm:$0xff] %v241
        %250 = vst [vmem:[#allocation2 + $0x10] sm:$0xff] %v242
        %251 = vst [vmem:[#allocation2 + $0x28] sm:$0xff] %v243
        %252 = vst [vmem:[#allocation2 + $0x30] sm:$0xff] %v244
        %v253 = vlaneseq
        %v254 = vand.u32 %v253, 127
        %v255 = vadd.s32 %v254, 128
        %vm256 = vcmp.lt.s32.totalorder %v254, 0
        %v257 = vsub.s32 0, %v254
        %v258 = vsel %vm256, %v257, %v254
        %v259 = vshrl.u32 %v258, 4
        %v260 = vand.u32 %v258, 15
        %v261 = vsub.s32 0, %v260
        %v262 = vsel %vm256, %v261, %v260
        %vm263 = vcmp.lt.s32.totalorder %v255, 0
        %v264 = vsub.s32 0, %v255
        %v265 = vsel %vm263, %v264, %v255
        %v266 = vshrl.u32 %v265, 4
        %v267 = vand.u32 %v265, 15
        %v268 = vsub.s32 0, %v267
        %v269 = vsel %vm263, %v268, %v267
        %vm270 = vcmp.ne.s32.totalorder %v262, 0
        %vm271 = vcmp.ne.s32.totalorder %v269, 0
        %vm272 = vcmp.lt.s32.totalorder %v262, 0
        %vm273 = vcmp.lt.s32.totalorder %v269, 0
        %vm274 = vmand %vm272, %vm270
        %vm275 = vmand %vm273, %vm271
        %v276 = vadd.s32 %v262, 16
        %v277 = vadd.s32 %v269, 16
        %v278 = vsel %vm274, %v276, %v262
        %v279 = vsel %vm275, %v277, %v269
        %vm280 = vcmp.ge.s32.totalorder %v278, 1
        %vm281 = vcmp.ge.s32.totalorder %v279, 1
        %vm282 = vcmp.le.s32.totalorder %v278, 14
        %vm283 = vcmp.le.s32.totalorder %v279, 14
        %v284 = vld [vmem:[#allocation2] sm:$0xff]
        %v285 = vld [vmem:[#allocation2 + $0x8] sm:$0xff]
        %v286 = vld [vmem:[#allocation2 + $0x10] sm:$0xff]
        %v287 = vld [vmem:[#allocation2 + $0x20] sm:$0xff]
        %v288 = vld [vmem:[#allocation2 + $0x28] sm:$0xff]
        %v289 = vld [vmem:[#allocation2 + $0x30] sm:$0xff]
        %vm290 = vmpackc.low %vm281, %vm280
        %v291 = vsel %vm290, 65537, 0
        %v292 = vlaneseq
        %v293 = vshrl.u32 %v292, 7
        %v294 = vsub.s32 0, %v293
        %v295 = vrot.slane %v291, %v294
        %v296 = vlaneseq
        %v297 = vshrl.u32 %v296, 7
        %v298 = vsub.s32 4, %v297
        %v299 = vrot.slane %v291, %v298
        %300 = vrot.lane.b32.xlu0 %v295, 111
        %v301 = vpop.permute.xlu0 %300
        %302 = vrot.lane.b32.xlu0 %v299, 111
        %v303 = vpop.permute.xlu0 %302
        %vm304 = vcmask 908288
        %v305 = vsel %vm304, %v301, %v303
        %vm306 = vcmp.ne.s16.totalorder %v301, 0
        %vm307 = vcmp.ne.s16.totalorder %v305, 0
        %vm308 = vcmp.ne.s16.totalorder %v303, 0
        %v309 = vsel %vm306, %v284, 0
        %v310 = vsel %vm307, %v285, 0
        %v311 = vsel %vm308, %v286, 0
        %v312 = vsel %vm306, %v287, 0
        %v313 = vsel %vm307, %v288, 0
        %v314 = vsel %vm308, %v289, 0
        %321 = vrot.lane.b32.xlu0 %v309, 17
        %v322 = vpop.permute.xlu0 %321
        %323 = vrot.lane.b32.xlu0 %v310, 17
        %v324 = vpop.permute.xlu0 %323
        %325 = vrot.lane.b32.xlu0 %v311, 17
        %v326 = vpop.permute.xlu0 %325
        %327 = vrot.lane.b32.xlu0 %v312, 17
        %v328 = vpop.permute.xlu0 %327
        %329 = vrot.lane.b32.xlu0 %v313, 17
        %v330 = vpop.permute.xlu0 %329
        %331 = vrot.lane.b32.xlu0 %v314, 17
        %v332 = vpop.permute.xlu0 %331
        %vm333 = vcmask 138240
        %v334 = vsel %vm333, %v322, %v324
        %v335 = vsel %vm333, %v324, %v326
        %v336 = vsel %vm333, %v328, %v330
        %v337 = vsel %vm333, %v330, %v332
        %342 = vst [vmem:[#allocation3] sm:$0xff] %v334
        %343 = vst [vmem:[#allocation3 + $0x8] sm:$0xff] %v335
        %344 = vst [vmem:[#allocation3 + $0x10] sm:$0xff] %v336
        %345 = vst [vmem:[#allocation3 + $0x18] sm:$0xff] %v337
        %v346 = vld [vmem:[#allocation2] sm:$0xff]
        %v347 = vld [vmem:[#allocation2 + $0x8] sm:$0xff]
        %v348 = vld [vmem:[#allocation2 + $0x10] sm:$0xff]
        %v349 = vld [vmem:[#allocation2 + $0x20] sm:$0xff]
        %v350 = vld [vmem:[#allocation2 + $0x28] sm:$0xff]
        %v351 = vld [vmem:[#allocation2 + $0x30] sm:$0xff]
        %358 = vrot.lane.b32.xlu0 %v346, 16
        %v359 = vpop.permute.xlu0 %358
        %360 = vrot.lane.b32.xlu0 %v347, 16
        %v361 = vpop.permute.xlu0 %360
        %362 = vrot.lane.b32.xlu0 %v348, 16
        %v363 = vpop.permute.xlu0 %362
        %364 = vrot.lane.b32.xlu0 %v349, 16
        %v365 = vpop.permute.xlu0 %364
        %366 = vrot.lane.b32.xlu0 %v350, 16
        %v367 = vpop.permute.xlu0 %366
        %368 = vrot.lane.b32.xlu0 %v351, 16
        %v369 = vpop.permute.xlu0 %368
        %vm370 = vcmask 130048
        %v371 = vsel %vm370, %v359, %v361
        %v372 = vsel %vm370, %v361, %v363
        %v373 = vsel %vm370, %v365, %v367
        %v374 = vsel %vm370, %v367, %v369
        %379 = vst [vmem:[#allocation3 + $0x20] sm:$0xff] %v371
        %380 = vst [vmem:[#allocation3 + $0x28] sm:$0xff] %v372
        %381 = vst [vmem:[#allocation3 + $0x30] sm:$0xff] %v373
        %382 = vst [vmem:[#allocation3 + $0x38] sm:$0xff] %v374
        %v383 = vld [vmem:[#allocation2] sm:$0xff]
        %v384 = vld [vmem:[#allocation2 + $0x8] sm:$0xff]
        %v385 = vld [vmem:[#allocation2 + $0x10] sm:$0xff]
        %v386 = vld [vmem:[#allocation2 + $0x20] sm:$0xff]
        %v387 = vld [vmem:[#allocation2 + $0x28] sm:$0xff]
        %v388 = vld [vmem:[#allocation2 + $0x30] sm:$0xff]
        %vm389 = vmpackc.low %vm283, %vm282
        %v390 = vsel %vm389, 65537, 0
        %v391 = vlaneseq
        %v392 = vshrl.u32 %v391, 7
        %v393 = vsub.s32 0, %v392
        %v394 = vrot.slane %v390, %v393
        %v395 = vlaneseq
        %v396 = vshrl.u32 %v395, 7
        %v397 = vsub.s32 4, %v396
        %v398 = vrot.slane %v390, %v397
        %399 = vrot.lane.b32.xlu0 %v394, 113
        %v400 = vpop.permute.xlu0 %399
        %401 = vrot.lane.b32.xlu0 %v398, 113
        %v402 = vpop.permute.xlu0 %401
        %vm403 = vcmask 924672
        %v404 = vsel %vm403, %v400, %v402
        %vm405 = vcmp.ne.s16.totalorder %v400, 0
        %vm406 = vcmp.ne.s16.totalorder %v404, 0
        %vm407 = vcmp.ne.s16.totalorder %v402, 0
        %v408 = vsel %vm405, %v383, 0
        %v409 = vsel %vm406, %v384, 0
        %v410 = vsel %vm407, %v385, 0
        %v411 = vsel %vm405, %v386, 0
        %v412 = vsel %vm406, %v387, 0
        %v413 = vsel %vm407, %v388, 0
        %420 = vrot.lane.b32.xlu0 %v408, 15
        %v421 = vpop.permute.xlu0 %420
        %422 = vrot.lane.b32.xlu0 %v409, 15
        %v423 = vpop.permute.xlu0 %422
        %424 = vrot.lane.b32.xlu0 %v410, 15
        %v425 = vpop.permute.xlu0 %424
        %426 = vrot.lane.b32.xlu0 %v411, 15
        %v427 = vpop.permute.xlu0 %426
        %428 = vrot.lane.b32.xlu0 %v412, 15
        %v429 = vpop.permute.xlu0 %428
        %430 = vrot.lane.b32.xlu0 %v413, 15
        %v431 = vpop.permute.xlu0 %430
        %vm432 = vcmask 121856
        %v433 = vsel %vm432, %v421, %v423
        %v434 = vsel %vm432, %v423, %v425
        %v435 = vsel %vm432, %v427, %v429
        %v436 = vsel %vm432, %v429, %v431
        %441 = vst [vmem:[#allocation3 + $0x40] sm:$0xff] %v433
        %442 = vst [vmem:[#allocation3 + $0x48] sm:$0xff] %v434
        %443 = vst [vmem:[#allocation3 + $0x50] sm:$0xff] %v435
        %444 = vst [vmem:[#allocation3 + $0x58] sm:$0xff] %v436
        %v445 = vld [vmem:[#allocation2] sm:$0xff]
        %v446 = vld [vmem:[#allocation2 + $0x8] sm:$0xff]
        %v447 = vld [vmem:[#allocation2 + $0x10] sm:$0xff]
        %v448 = vld [vmem:[#allocation2 + $0x20] sm:$0xff]
        %v449 = vld [vmem:[#allocation2 + $0x28] sm:$0xff]
        %v450 = vld [vmem:[#allocation2 + $0x30] sm:$0xff]
        %451 = vrot.lane.b32.xlu0 %v295, 127
        %v452 = vpop.permute.xlu0 %451
        %453 = vrot.lane.b32.xlu0 %v299, 127
        %v454 = vpop.permute.xlu0 %453
        %vm455 = vcmask 1039360
        %v456 = vsel %vm455, %v452, %v454
        %vm457 = vcmp.ne.s16.totalorder %v452, 0
        %vm458 = vcmp.ne.s16.totalorder %v456, 0
        %vm459 = vcmp.ne.s16.totalorder %v454, 0
        %v460 = vsel %vm457, %v445, 0
        %v461 = vsel %vm458, %v446, 0
        %v462 = vsel %vm459, %v447, 0
        %v463 = vsel %vm457, %v448, 0
        %v464 = vsel %vm458, %v449, 0
        %v465 = vsel %vm459, %v450, 0
        %472 = vrot.lane.b32.xlu0 %v460, 1
        %v473 = vpop.permute.xlu0 %472
        %474 = vrot.lane.b32.xlu0 %v461, 1
        %v475 = vpop.permute.xlu0 %474
        %476 = vrot.lane.b32.xlu0 %v462, 1
        %v477 = vpop.permute.xlu0 %476
        %478 = vrot.lane.b32.xlu0 %v463, 1
        %v479 = vpop.permute.xlu0 %478
        %480 = vrot.lane.b32.xlu0 %v464, 1
        %v481 = vpop.permute.xlu0 %480
        %482 = vrot.lane.b32.xlu0 %v465, 1
        %v483 = vpop.permute.xlu0 %482
        %vm484 = vcmask 7168
        %v485 = vsel %vm484, %v473, %v475
        %v486 = vsel %vm484, %v475, %v477
        %v487 = vsel %vm484, %v479, %v481
        %v488 = vsel %vm484, %v481, %v483
        %493 = vst [vmem:[#allocation3 + $0x60] sm:$0xff] %v485
        %494 = vst [vmem:[#allocation3 + $0x68] sm:$0xff] %v486
        %495 = vst [vmem:[#allocation3 + $0x70] sm:$0xff] %v487
        %496 = vst [vmem:[#allocation3 + $0x78] sm:$0xff] %v488
        %v497 = vld [vmem:[#allocation2 + $0x8] sm:$0xff]
        %v498 = vld [vmem:[#allocation2 + $0x10] sm:$0xff]
        %v499 = vld [vmem:[#allocation2 + $0x28] sm:$0xff]
        %v500 = vld [vmem:[#allocation2 + $0x30] sm:$0xff]
        %501 = vst [vmem:[#allocation3 + $0x80] sm:$0xff] %v497
        %502 = vst [vmem:[#allocation3 + $0x88] sm:$0xff] %v498
        %503 = vst [vmem:[#allocation3 + $0x90] sm:$0xff] %v499
        %504 = vst [vmem:[#allocation3 + $0x98] sm:$0xff] %v500
        %v505 = vld [vmem:[#allocation2 + $0x8] sm:$0xff]
        %v506 = vld [vmem:[#allocation2 + $0x10] sm:$0xff]
        %v507 = vld [vmem:[#allocation2 + $0x18] sm:$0xff]
        %v508 = vld [vmem:[#allocation2 + $0x28] sm:$0xff]
        %v509 = vld [vmem:[#allocation2 + $0x30] sm:$0xff]
        %v510 = vld [vmem:[#allocation2 + $0x38] sm:$0xff]
        %511 = vrot.lane.b32.xlu0 %v394, 1
        %v512 = vpop.permute.xlu0 %511
        %513 = vrot.lane.b32.xlu0 %v398, 1
        %v514 = vpop.permute.xlu0 %513
        %v515 = vsel %vm484, %v512, %v514
        %vm516 = vcmp.ne.s16.totalorder %v512, 0
        %vm517 = vcmp.ne.s16.totalorder %v515, 0
        %vm518 = vcmp.ne.s16.totalorder %v514, 0
        %v519 = vsel %vm516, %v505, 0
        %v520 = vsel %vm517, %v506, 0
        %v521 = vsel %vm518, %v507, 0
        %v522 = vsel %vm516, %v508, 0
        %v523 = vsel %vm517, %v509, 0
        %v524 = vsel %vm518, %v510, 0
        %531 = vrot.lane.b32.xlu0 %v519, 127
        %v532 = vpop.permute.xlu0 %531
        %533 = vrot.lane.b32.xlu0 %v520, 127
        %v534 = vpop.permute.xlu0 %533
        %535 = vrot.lane.b32.xlu0 %v521, 127
        %v536 = vpop.permute.xlu0 %535
        %537 = vrot.lane.b32.xlu0 %v522, 127
        %v538 = vpop.permute.xlu0 %537
        %539 = vrot.lane.b32.xlu0 %v523, 127
        %v540 = vpop.permute.xlu0 %539
        %541 = vrot.lane.b32.xlu0 %v524, 127
        %v542 = vpop.permute.xlu0 %541
        %v543 = vsel %vm455, %v532, %v534
        %v544 = vsel %vm455, %v534, %v536
        %v545 = vsel %vm455, %v538, %v540
        %v546 = vsel %vm455, %v540, %v542
        %551 = vst [vmem:[#allocation3 + $0xa0] sm:$0xff] %v543
        %552 = vst [vmem:[#allocation3 + $0xa8] sm:$0xff] %v544
        %553 = vst [vmem:[#allocation3 + $0xb0] sm:$0xff] %v545
        %554 = vst [vmem:[#allocation3 + $0xb8] sm:$0xff] %v546
        %v555 = vld [vmem:[#allocation2 + $0x8] sm:$0xff]
        %v556 = vld [vmem:[#allocation2 + $0x10] sm:$0xff]
        %v557 = vld [vmem:[#allocation2 + $0x18] sm:$0xff]
        %v558 = vld [vmem:[#allocation2 + $0x28] sm:$0xff]
        %v559 = vld [vmem:[#allocation2 + $0x30] sm:$0xff]
        %v560 = vld [vmem:[#allocation2 + $0x38] sm:$0xff]
        %561 = vrot.lane.b32.xlu0 %v295, 15
        %v562 = vpop.permute.xlu0 %561
        %563 = vrot.lane.b32.xlu0 %v299, 15
        %v564 = vpop.permute.xlu0 %563
        %v565 = vsel %vm432, %v562, %v564
        %vm566 = vcmp.ne.s16.totalorder %v562, 0
        %vm567 = vcmp.ne.s16.totalorder %v565, 0
        %vm568 = vcmp.ne.s16.totalorder %v564, 0
        %v569 = vsel %vm566, %v555, 0
        %v570 = vsel %vm567, %v556, 0
        %v571 = vsel %vm568, %v557, 0
        %v572 = vsel %vm566, %v558, 0
        %v573 = vsel %vm567, %v559, 0
        %v574 = vsel %vm568, %v560, 0
        %581 = vrot.lane.b32.xlu0 %v569, 113
        %v582 = vpop.permute.xlu0 %581
        %583 = vrot.lane.b32.xlu0 %v570, 113
        %v584 = vpop.permute.xlu0 %583
        %585 = vrot.lane.b32.xlu0 %v571, 113
        %v586 = vpop.permute.xlu0 %585
        %587 = vrot.lane.b32.xlu0 %v572, 113
        %v588 = vpop.permute.xlu0 %587
        %589 = vrot.lane.b32.xlu0 %v573, 113
        %v590 = vpop.permute.xlu0 %589
        %591 = vrot.lane.b32.xlu0 %v574, 113
        %v592 = vpop.permute.xlu0 %591
        %v593 = vsel %vm403, %v582, %v584
        %v594 = vsel %vm403, %v584, %v586
        %v595 = vsel %vm403, %v588, %v590
        %v596 = vsel %vm403, %v590, %v592
        %601 = vst [vmem:[#allocation3 + $0xc0] sm:$0xff] %v593
        %602 = vst [vmem:[#allocation3 + $0xc8] sm:$0xff] %v594
        %603 = vst [vmem:[#allocation3 + $0xd0] sm:$0xff] %v595
        %604 = vst [vmem:[#allocation3 + $0xd8] sm:$0xff] %v596
        %v605 = vld [vmem:[#allocation2 + $0x8] sm:$0xff]
        %v606 = vld [vmem:[#allocation2 + $0x10] sm:$0xff]
        %v607 = vld [vmem:[#allocation2 + $0x18] sm:$0xff]
        %v608 = vld [vmem:[#allocation2 + $0x28] sm:$0xff]
        %v609 = vld [vmem:[#allocation2 + $0x30] sm:$0xff]
        %v610 = vld [vmem:[#allocation2 + $0x38] sm:$0xff]
        %617 = vrot.lane.b32.xlu0 %v605, 112
        %v618 = vpop.permute.xlu0 %617
        %619 = vrot.lane.b32.xlu0 %v606, 112
        %v620 = vpop.permute.xlu0 %619
        %621 = vrot.lane.b32.xlu0 %v607, 112
        %v622 = vpop.permute.xlu0 %621
        %623 = vrot.lane.b32.xlu0 %v608, 112
        %v624 = vpop.permute.xlu0 %623
        %625 = vrot.lane.b32.xlu0 %v609, 112
        %v626 = vpop.permute.xlu0 %625
        %627 = vrot.lane.b32.xlu0 %v610, 112
        %v628 = vpop.permute.xlu0 %627
        %vm629 = vcmask 916480
        %v630 = vsel %vm629, %v618, %v620
        %v631 = vsel %vm629, %v620, %v622
        %v632 = vsel %vm629, %v624, %v626
        %v633 = vsel %vm629, %v626, %v628
        %638 = vst [vmem:[#allocation3 + $0xe0] sm:$0xff] %v630
        %639 = vst [vmem:[#allocation3 + $0xe8] sm:$0xff] %v631
        %640 = vst [vmem:[#allocation3 + $0xf0] sm:$0xff] %v632
        %641 = vst [vmem:[#allocation3 + $0xf8] sm:$0xff] %v633
        %v642 = vld [vmem:[#allocation2 + $0x8] sm:$0xff]
        %v643 = vld [vmem:[#allocation2 + $0x10] sm:$0xff]
        %v644 = vld [vmem:[#allocation2 + $0x18] sm:$0xff]
        %v645 = vld [vmem:[#allocation2 + $0x28] sm:$0xff]
        %v646 = vld [vmem:[#allocation2 + $0x30] sm:$0xff]
        %v647 = vld [vmem:[#allocation2 + $0x38] sm:$0xff]
        %648 = vrot.lane.b32.xlu0 %v394, 17
        %v649 = vpop.permute.xlu0 %648
        %650 = vrot.lane.b32.xlu0 %v398, 17
        %v651 = vpop.permute.xlu0 %650
        %v652 = vsel %vm333, %v649, %v651
        %vm653 = vcmp.ne.s16.totalorder %v649, 0
        %vm654 = vcmp.ne.s16.totalorder %v652, 0
        %vm655 = vcmp.ne.s16.totalorder %v651, 0
        %v656 = vsel %vm653, %v642, 0
        %v657 = vsel %vm654, %v643, 0
        %v658 = vsel %vm655, %v644, 0
        %v659 = vsel %vm653, %v645, 0
        %v660 = vsel %vm654, %v646, 0
        %v661 = vsel %vm655, %v647, 0
        %668 = vrot.lane.b32.xlu0 %v656, 111
        %v669 = vpop.permute.xlu0 %668
        %670 = vrot.lane.b32.xlu0 %v657, 111
        %v671 = vpop.permute.xlu0 %670
        %672 = vrot.lane.b32.xlu0 %v658, 111
        %v673 = vpop.permute.xlu0 %672
        %674 = vrot.lane.b32.xlu0 %v659, 111
        %v675 = vpop.permute.xlu0 %674
        %676 = vrot.lane.b32.xlu0 %v660, 111
        %v677 = vpop.permute.xlu0 %676
        %678 = vrot.lane.b32.xlu0 %v661, 111
        %v679 = vpop.permute.xlu0 %678
        %v680 = vsel %vm304, %v669, %v671
        %v681 = vsel %vm304, %v671, %v673
        %v682 = vsel %vm304, %v675, %v677
        %v683 = vsel %vm304, %v677, %v679
        %688 = vst [vmem:[#allocation3 + $0x100] sm:$0xff] %v680
        %689 = vst [vmem:[#allocation3 + $0x108] sm:$0xff] %v681
        %690 = vst [vmem:[#allocation3 + $0x110] sm:$0xff] %v682
        %691 = vst [vmem:[#allocation3 + $0x118] sm:$0xff] %v683
        %v692 = vld [vmem:[#allocation7] sm:$0xff]
        %v693 = vld [vmem:[#allocation7 + $0x8] sm:$0xf]
        %v694 = vld [vmem:[#allocation7 + $0xc] sm:$0xff]
        %v695 = vld [vmem:[#allocation7 + $0x14] sm:$0xf]
        %v696 = vld [vmem:[#allocation7 + $0x18] sm:$0xff]
        %v697 = vld [vmem:[#allocation7 + $0x20] sm:$0xf]
        %v698 = vld [vmem:[#allocation7 + $0x24] sm:$0xff]
        %v699 = vld [vmem:[#allocation7 + $0x2c] sm:$0xf]
        %v700 = vld [vmem:[#allocation3] sm:$0xff]
        %v701 = vld [vmem:[#allocation3 + $0x8] sm:$0xff]
        %v702 = vld [vmem:[#allocation3 + $0x10] sm:$0xff]
        %v703 = vld [vmem:[#allocation3 + $0x18] sm:$0xff]
        %v704 = vld [vmem:[#allocation3 + $0x20] sm:$0xff]
        %v705 = vld [vmem:[#allocation3 + $0x28] sm:$0xff]
        %v706 = vld [vmem:[#allocation3 + $0x30] sm:$0xff]
        %v707 = vld [vmem:[#allocation3 + $0x38] sm:$0xff]
        %v708 = vld [vmem:[#allocation3 + $0x40] sm:$0xff]
        %v709 = vld [vmem:[#allocation3 + $0x48] sm:$0xff]
        %v710 = vld [vmem:[#allocation3 + $0x50] sm:$0xff]
        %v711 = vld [vmem:[#allocation3 + $0x58] sm:$0xff]
        %v712 = vld [vmem:[#allocation3 + $0x60] sm:$0xff]
        %v713 = vld [vmem:[#allocation3 + $0x68] sm:$0xff]
        %v714 = vld [vmem:[#allocation3 + $0x70] sm:$0xff]
        %v715 = vld [vmem:[#allocation3 + $0x78] sm:$0xff]
        %v716 = vld [vmem:[#allocation3 + $0x80] sm:$0xff]
        %v717 = vld [vmem:[#allocation3 + $0x88] sm:$0xff]
        %v718 = vld [vmem:[#allocation3 + $0x90] sm:$0xff]
        %v719 = vld [vmem:[#allocation3 + $0x98] sm:$0xff]
        %v720 = vld [vmem:[#allocation3 + $0xa0] sm:$0xff]
        %v721 = vld [vmem:[#allocation3 + $0xa8] sm:$0xff]
        %v722 = vld [vmem:[#allocation3 + $0xb0] sm:$0xff]
        %v723 = vld [vmem:[#allocation3 + $0xb8] sm:$0xff]
        %v724 = vld [vmem:[#allocation3 + $0xc0] sm:$0xff]
        %v725 = vld [vmem:[#allocation3 + $0xc8] sm:$0xff]
        %v726 = vld [vmem:[#allocation3 + $0xd0] sm:$0xff]
        %v727 = vld [vmem:[#allocation3 + $0xd8] sm:$0xff]
        %v728 = vld [vmem:[#allocation3 + $0xe0] sm:$0xff]
        %v729 = vld [vmem:[#allocation3 + $0xe8] sm:$0xff]
        %v730 = vld [vmem:[#allocation3 + $0xf0] sm:$0xff]
        %v731 = vld [vmem:[#allocation3 + $0xf8] sm:$0xff]
        %v732 = vld [vmem:[#allocation3 + $0x100] sm:$0xff]
        %v733 = vld [vmem:[#allocation3 + $0x108] sm:$0xff]
        %v734 = vld [vmem:[#allocation3 + $0x110] sm:$0xff]
        %v735 = vld [vmem:[#allocation3 + $0x118] sm:$0xff]
        %v736 = vld [vmem:[#allocation9] sm:$0xff]
        %v737 = vld [vmem:[#allocation9 + $0x8] sm:$0xff]
        %v738 = vld [vmem:[#allocation9 + $0x10] sm:$0xff]
        %v739 = vld [vmem:[#allocation9 + $0x18] sm:$0xff]
        %741 = vset.pattern.permute.xlu0 0
        %742 = vperm.xlu0 %741, %v736
        %v743 = vpop.permute.xlu0 %742
        %746 = vset.pattern.permute.xlu0 0
        %747 = vperm.xlu0 %746, %v737
        %v748 = vpop.permute.xlu0 %747
        %751 = vset.pattern.permute.xlu0 0
        %752 = vperm.xlu0 %751, %v738
        %v753 = vpop.permute.xlu0 %752
        %756 = vset.pattern.permute.xlu0 0
        %757 = vperm.xlu0 %756, %v739
        %v758 = vpop.permute.xlu0 %757
        %v768 = vunpack.c.l.b16 %v692
        %v769 = vunpack.c.h.b16 %v692
        %v770 = vunpack.c.l.b16 %v693
        %v771 = vunpack.c.l.b16 %v694
        %v772 = vunpack.c.h.b16 %v694
        %v773 = vunpack.c.l.b16 %v695
        %v774 = vunpack.c.l.b16 %v696
        %v775 = vunpack.c.h.b16 %v696
        %v776 = vunpack.c.l.b16 %v697
        %v777 = vunpack.c.l.b16 %v698
        %v778 = vunpack.c.h.b16 %v698
        %v779 = vunpack.c.l.b16 %v699
        %v780 = vpack.c.b16 %v771, %v768
        %v781 = vpack.c.b16 %v772, %v769
        %v782 = vpack.c.b16 %v773, %v770
        %v783 = vpack.c.b16 %v777, %v774
        %v784 = vpack.c.b16 %v778, %v775
        %v785 = vpack.c.b16 %v779, %v776
        %vm790 = vcmask 261120
        %v792 = vsel %vm790, %v782, 0
        %v795 = vsel %vm790, %v785, 0
        %797 = vmatprep.subr.bf16.mxu0 %v701
        %798 = vmatpush1.bf16.msra.mxu0 %v700
        %799 = vmatprep.subr.bf16.mxu0 %v703
        %800 = vmatpush1.bf16.msra.mxu0 %v702
        %801 = vmatprep.subr.bf16.mxu0 %v705
        %802 = vmatpush1.bf16.msra.mxu0 %v704
        %803 = vmatprep.subr.bf16.mxu0 %v707
        %804 = vmatpush1.bf16.msra.mxu0 %v706
        %805 = vmatprep.subr.bf16.mxu0 %v709
        %806 = vmatpush1.bf16.msra.mxu0 %v708
        %807 = vmatprep.subr.bf16.mxu0 %v711
        %808 = vmatpush1.bf16.msra.mxu0 %v710
        %809 = vmatprep.subr.bf16.mxu0 %v713
        %810 = vmatpush1.bf16.msra.mxu0 %v712
        %811 = vmatprep.subr.bf16.mxu0 %v715
        %812 = vmatpush1.bf16.msra.mxu0 %v714
        %813 = vmatprep.subr.bf16.mxu0 %v717
        %814 = vmatpush1.bf16.msra.mxu0 %v716
        %815 = vmatprep.subr.bf16.mxu0 %v719
        %816 = vmatpush1.bf16.msra.mxu0 %v718
        %817 = vmatprep.subr.bf16.mxu0 %v721
        %818 = vmatpush1.bf16.msra.mxu0 %v720
        %819 = vmatprep.subr.bf16.mxu0 %v723
        %820 = vmatpush1.bf16.msra.mxu0 %v722
        %821 = vmatprep.subr.bf16.mxu0 %v725
        %822 = vmatpush1.bf16.msra.mxu0 %v724
        %823 = vmatprep.subr.bf16.mxu0 %v727
        %824 = vmatpush1.bf16.msra.mxu0 %v726
        %825 = vmatprep.subr.bf16.mxu0 %v729
        %826 = vmatpush1.bf16.msra.mxu0 %v728
        %827 = vmatprep.subr.bf16.mxu0 %v731
        %828 = vmatpush1.bf16.msra.mxu0 %v730
        %829 = vmatprep.mubr.bf16.mxu0 %v781
        %830 = vmatmul.mubr.bf16.gmra.mrb[0].mxu0 %v780
        %v831 = vpop.f32.mrb[0].mxu0
        %v832 = vadd.f32 %v743, %v831
        %v833 = vpop.f32.mrb[0].mxu0
        %v834 = vadd.f32 %v743, %v833
        %v835 = vpop.f32.mrb[0].mxu0
        %v836 = vadd.f32 %v748, %v835
        %v837 = vpop.f32.mrb[0].mxu0
        %v838 = vadd.f32 %v748, %v837
        %839 = vmatprep.mubr.bf16.mxu0 %v784
        %840 = vmatmul.mubr.bf16.gmra.mrb[0].mxu0 %v783
        %v841 = vpop.f32.mrb[0].mxu0
        %v842 = vadd.f32 %v753, %v841
        %v843 = vpop.f32.mrb[0].mxu0
        %v844 = vadd.f32 %v753, %v843
        %v845 = vpop.f32.mrb[0].mxu0
        %v846 = vadd.f32 %v758, %v845
        %v847 = vpop.f32.mrb[0].mxu0
        %v848 = vadd.f32 %v758, %v847
        %849 = vdwg.mxu0
        %850 = vmatprep.subr.bf16.mxu0 %v733
        %851 = vmatpush1.bf16.msra.mxu0 %v732
        %852 = vmatprep.subr.bf16.mxu0 %v735
        %853 = vmatpush1.bf16.msra.mxu0 %v734
        %854 = vmatprep.subr.bf16.mxu0 0
        %855 = vmatpush1.bf16.msra.mxu0 0
        %856 = vmatprep.subr.bf16.mxu0 0
        %857 = vmatpush1.bf16.msra.mxu0 0
        %858 = vmatprep.subr.bf16.mxu0 0
        %859 = vmatpush1.bf16.msra.mxu0 0
        %860 = vmatprep.subr.bf16.mxu0 0
        %861 = vmatpush1.bf16.msra.mxu0 0
        %862 = vmatprep.subr.bf16.mxu0 0
        %863 = vmatpush1.bf16.msra.mxu0 0
        %864 = vmatprep.subr.bf16.mxu0 0
        %865 = vmatpush1.bf16.msra.mxu0 0
        %866 = vmatprep.subr.bf16.mxu0 0
        %867 = vmatpush1.bf16.msra.mxu0 0
        %868 = vmatprep.subr.bf16.mxu0 0
        %869 = vmatpush1.bf16.msra.mxu0 0
        %870 = vmatprep.subr.bf16.mxu0 0
        %871 = vmatpush1.bf16.msra.mxu0 0
        %872 = vmatprep.subr.bf16.mxu0 0
        %873 = vmatpush1.bf16.msra.mxu0 0
        %874 = vmatprep.subr.bf16.mxu0 0
        %875 = vmatpush1.bf16.msra.mxu0 0
        %876 = vmatprep.subr.bf16.mxu0 0
        %877 = vmatpush1.bf16.msra.mxu0 0
        %878 = vmatprep.subr.bf16.mxu0 0
        %879 = vmatpush1.bf16.msra.mxu0 0
        %880 = vmatprep.subr.bf16.mxu0 0
        %881 = vmatpush1.bf16.msra.mxu0 0
        %882 = vmatprep.mubr.bf16.mxu0 0
        %883 = vmatmul.mubr.bf16.gmra.mrb[0].mxu0 %v792
        %v884 = vpop.f32.mrb[0].mxu0
        %v885 = vadd.f32 %v832, %v884
        %v886 = vpop.f32.mrb[0].mxu0
        %v887 = vadd.f32 %v834, %v886
        %v888 = vpop.f32.mrb[0].mxu0
        %v889 = vadd.f32 %v836, %v888
        %v890 = vpop.f32.mrb[0].mxu0
        %v891 = vadd.f32 %v838, %v890
        %892 = vmatprep.mubr.bf16.mxu0 0
        %893 = vmatmul.mubr.bf16.gmra.mrb[0].mxu0 %v795
        %v894 = vpop.f32.mrb[0].mxu0
        %v895 = vadd.f32 %v842, %v894
        %v896 = vpop.f32.mrb[0].mxu0
        %v897 = vadd.f32 %v844, %v896
        %v898 = vpop.f32.mrb[0].mxu0
        %v899 = vadd.f32 %v846, %v898
        %v900 = vpop.f32.mrb[0].mxu0
        %v901 = vadd.f32 %v848, %v900
        %902 = vdwg.mxu0
        %vm903 = vcmp.ge.f32.partialorder %v885, 0.0
        %vm904 = vcmp.ge.f32.partialorder %v887, 0.0
        %vm905 = vcmp.ge.f32.partialorder %v889, 0.0
        %vm906 = vcmp.ge.f32.partialorder %v891, 0.0
        %vm907 = vcmp.ge.f32.partialorder %v895, 0.0
        %vm908 = vcmp.ge.f32.partialorder %v897, 0.0
        %vm909 = vcmp.ge.f32.partialorder %v899, 0.0
        %vm910 = vcmp.ge.f32.partialorder %v901, 0.0
        %v911 = vmul.f32 %v885, 0.1
        %v912 = vmul.f32 %v887, 0.1
        %v913 = vmul.f32 %v889, 0.1
        %v914 = vmul.f32 %v891, 0.1
        %v915 = vmul.f32 %v895, 0.1
        %v916 = vmul.f32 %v897, 0.1
        %v917 = vmul.f32 %v899, 0.1
        %v918 = vmul.f32 %v901, 0.1
        %v919 = vsel %vm903, %v885, %v911
        %v920 = vsel %vm904, %v887, %v912
        %v921 = vsel %vm905, %v889, %v913
        %v922 = vsel %vm906, %v891, %v914
        %v923 = vsel %vm907, %v895, %v915
        %v924 = vsel %vm908, %v897, %v916
        %v925 = vsel %vm909, %v899, %v917
        %v926 = vsel %vm910, %v901, %v918
        %927 = vst [vmem:[%s217] sm:$0xff] %v919
        %928 = vst [vmem:[%s217 + $0x8] sm:$0xff] %v920
        %929 = vst [vmem:[%s217 + $0x10] sm:$0xff] %v921
        %930 = vst [vmem:[%s217 + $0x18] sm:$0xff] %v922
        %931 = vst [vmem:[%s217 + $0x20] sm:$0xff] %v923
        %932 = vst [vmem:[%s217 + $0x28] sm:$0xff] %v924
        %933 = vst [vmem:[%s217 + $0x30] sm:$0xff] %v925
        %934 = vst [vmem:[%s217 + $0x38] sm:$0xff] %v926
        %s935 = sand.u32 %s97, 1
        %s936 = scalar_lea.sflag [#allocation6], %s935
        %s937 = sand.u32 %s97, 1
        %s938 = smul.addr %s937, 64
        %s939 = scalar_lea.vmem [#allocation10], %s938
        // Predicated region
        $region45: #{tpu_custom_call.1} parent=31 // pred_check
          %p940 = pneg %p107
        $region46: #{tpu_custom_call.1} parent=31 // pred_check_branch
          %942 = sbr.rel (%p940) target = $region48
        $region47: #{tpu_custom_call.1} parent=31 // pred_region
          %s944 = ssub.s32 1024, 1024
          %945 = vsyncadd %s936, %s944
          %s946 = smul.addr %s21, 8
          %s947 = smul.addr %s946, 128
          %s948 = scalar_lea.hbm %s3, %s947
          %s949 = sshll.u32 %s939, 4
          %s950 = int_to_ptr.vmem [resolvable:$true] %s949
          %955 = dma.vmem_to_hbm [thread:$0]  %s950, 1024, %s948, %s936, 256, 256, 16
        $region48: #{tpu_custom_call.1} parent=31 // pred_fallthru
          _
      $region32: #{tpu_custom_call.1} parent=5 // pred_fallthru
        _
      %p956 = scmp.le.s32.totalorder 2, %s16
      // Predicated region
      $region49: #{tpu_custom_call.1} parent=5 // pred_check
        %p957 = pneg %p956
      $region50: #{tpu_custom_call.1} parent=5 // pred_check_branch
        %959 = sbr.rel (%p957) target = $region52
      $region51: #{tpu_custom_call.1} parent=5 // pred_region
        %s960 = ssub.s32 %s16, 2
        // Predicated region
        $region53: #{tpu_custom_call.1} parent=51 // pred_check
          %p961 = pneg %p113
        $region54: #{tpu_custom_call.1} parent=51 // pred_check_branch
          %963 = sbr.rel (%p961) target = $region56
        $region55: #{tpu_custom_call.1} parent=51 // pred_region
          %s964 = sand.u32 %s98, 1
          %s965 = scalar_lea.sflag [#allocation6], %s964
          %s966 = sand.u32 %s98, 1
          %s967 = smul.addr %s966, 64
          %s968 = scalar_lea.vmem [#allocation10], %s967
          %969 = dma.done %s965, 1024
        $region56: #{tpu_custom_call.1} parent=51 // pred_fallthru
          _
      $region52: #{tpu_custom_call.1} parent=5 // pred_fallthru
        _
    $region6: #{tpu_custom_call.1} parent=1 // loop_footer
      %s20 = sadd.s32 1, %s16
    $region7: #{tpu_custom_call.1} parent=1 // loop_footer_branch
      %15 = sbr.rel target = $region3
    $region8: #{tpu_custom_call.1} parent=1 // loop_exit
      _
    %970 = vsyncpa [#allocation5], 1
    %s971 = scalar_lea.sflag [#allocation5], 1
    %972 = vsyncpa %s971, 1
    %973 = vsyncpa [#allocation8], 1
    %974 = vsyncpa [#allocation6], 1
    %s975 = scalar_lea.sflag [#allocation6], 1
    %976 = vsyncpa %s975, 1

</llo_original>
